<compile_context>
chip_gen: v7x
topology: tpu7x:2x2x1
jax: 0.10.0
libtpu: 0.0.40
codegen_flags: <defaults>
</compile_context>

<pallas_src>
import jax
import jax.numpy as jnp
import numpy as np
from jax import lax
from jax.experimental import pallas as pl
from jax.experimental.pallas import tpu as pltpu

REEIG_EPS = 1e-4  # torchspdnet ReEig rectification threshold


def _make_bimap2_kernel(C, n):
    """Kernel over grid=(B,): one batch element per step."""
    def kernel(u_ref, s_ref, v_ref, o_ref):
        # u_ref: (C*n, C*n) block-diagonal eigenvector matrix for this batch element
        # s_ref: (1, C*n)   concatenated eigenvalues
        # v_ref: (C*n, C*n) fused BiMap∘BatchNorm weights, block (ci, co) = W'[co, ci]
        # o_ref: (n, C*n)   lane-dense output slab; column block co holds Z[b, co]
        u = u_ref[...]
        s = jnp.maximum(s_ref[...], REEIG_EPS)                     # ReEig rectification (f32)

        # ReEig reconstruction, block-diagonal over input channels: U diag(s) U^T
        rect = lax.dot_general(u * s, u, (((1,), (1,)), ((), ())),
                               preferred_element_type=jnp.float32)

        # BiMap + BatchNorm (folded):  V^T rect V  — diagonal (co, co) blocks are the outputs.
        v = v_ref[...]
        m = jnp.dot(rect, v, preferred_element_type=jnp.float32)
        y = lax.dot_general(v, m, (((0,), (0,)), ((), ())),        # V^T @ (rect @ V)
                            preferred_element_type=jnp.float32)

        # Gather the (co, co) diagonal blocks into one lane-dense (n, C*n) slab; single store.
        o_ref[...] = jnp.concatenate(
            [y[co * n:(co + 1) * n, co * n:(co + 1) * n] for co in range(C)],
            axis=1).astype(o_ref.dtype)

    return kernel


def _spd_pow(G, p):
    ev, evec = jnp.linalg.eigh(G)
    return (evec * (ev ** p)[None, :]) @ evec.T


def bimap_2_normal_forward(x, W, running_mean, bn_weight):
    """x: (B, C, n, n) SPD; W: (C, C, n, n) Stiefel; running_mean/bn_weight: (n, n) SPD."""
    B, C, n, _ = x.shape
    CN = C * n

    # TODO(synk): eigendecomposition (ReEig spectrum + SPD matrix roots for BatchNormSPD)
    # has no Pallas TPU equivalent; computed here with jnp.linalg.eigh as trace-time glue.
    s, u = jnp.linalg.eigh(x)                                   # s: (B,C,n), u: (B,C,n,n)

    # Fold BatchNormSPD (inference) into the BiMap weights: W' = W @ M^{-1/2} @ G^{1/2}
    # (valid because both matrix roots are symmetric).
    gn = _spd_pow(running_mean, -0.5)
    gp = _spd_pow(bn_weight, 0.5)
    gngp = (gn @ gp).astype(jnp.float32)
    Wp = jnp.einsum('ocij,jk->ocik', W.astype(jnp.float32), gngp)
    # V[(ci*n+i), (co*n+j)] = W'[co, ci, i, j]
    V = jnp.transpose(Wp, (1, 2, 0, 3)).reshape(CN, CN)

    # Block-diagonal eigenvector matrices and concatenated eigenvalues per batch element.
    eyeC = jnp.eye(C, dtype=jnp.float32)
    u_bd = jnp.einsum('bcij,cd->bcidj', u.astype(jnp.float32), eyeC).reshape(B, CN, CN)
    s_cat = s.astype(jnp.float32).reshape(B, 1, CN)

    out = pl.pallas_call(
        _make_bimap2_kernel(C, n),
        out_shape=jax.ShapeDtypeStruct((B, n, CN), jnp.float32),
        grid_spec=pltpu.PrefetchScalarGridSpec(
            num_scalar_prefetch=0,
            grid=(B,),                                           # one step per batch element
            in_specs=[
                pl.BlockSpec((pl.Squeezed(), CN, CN), lambda b: (b, 0, 0)),  # U (block-diag)
                pl.BlockSpec((pl.Squeezed(), 1, CN), lambda b: (b, 0, 0)),   # eigenvalues
                pl.BlockSpec((CN, CN), lambda b: (0, 0)),                    # fused weights
            ],
            out_specs=pl.BlockSpec((pl.Squeezed(), n, CN), lambda b: (b, 0, 0)),
        ),
        compiler_params=pltpu.CompilerParams(dimension_semantics=("parallel",)),
    )(u_bd, s_cat, V)

    # (B, n, C*n) lane-dense slab -> (B, C, n, n)
    return jnp.transpose(out.reshape(B, n, C, n), (0, 2, 1, 3))


def init_params(key, C, n):
    # BiMap Stiefel weights: per (co, ci) an orthogonal (n, n) matrix
    # (torchspdnet init uses an SVD basis of a random Gram matrix; QR is equivalent here).
    a = jax.random.normal(key, (C, C, n, n), dtype=jnp.float32)
    W, _ = jnp.linalg.qr(a)
    # BatchNormSPD parameters, as in its __init__: both identity SPD matrices.
    running_mean = jnp.eye(n, dtype=jnp.float32)
    bn_weight = jnp.eye(n, dtype=jnp.float32)
    return W, running_mean, bn_weight


def reference(x, W, running_mean, bn_weight):
    hp = jax.lax.Precision.HIGHEST
    s, u = jnp.linalg.eigh(x)
    s = jnp.maximum(s, REEIG_EPS)
    rect = jnp.einsum('bcik,bck,bcjk->bcij', u, s, u, precision=hp)
    y = jnp.einsum('ocki,bckl,oclj->boij', W, rect, W, precision=hp)
    gn = _spd_pow(running_mean, -0.5)
    gp = _spd_pow(bn_weight, 0.5)
    yc = jnp.einsum('ij,bojk,kl->boil', gn, y, gn, precision=hp)
    z = jnp.einsum('ij,bojk,kl->boil', gp, yc, gp, precision=hp)
    return z


if __name__ == "__main__":
    B, C, n = 2, 4, 16   # batch=2, C_in=4 channels, dim_in=16
    key = jax.random.PRNGKey(0)
    kx, kw = jax.random.split(key)

    # Build SPD inputs: x[b,c] = A A^T + eps I
    A = jax.random.normal(kx, (B, C, n, n), dtype=jnp.float32)
    x = jnp.einsum('bcik,bcjk->bcij', A, A) + 1e-3 * jnp.eye(n, dtype=jnp.float32)

    W, running_mean, bn_weight = init_params(kw, C, n)

    out = bimap_2_normal_forward(x, W, running_mean, bn_weight)
    out = jax.block_until_ready(out)

    ref = reference(x, W, running_mean, bn_weight)
    assert out.shape == (B, C, n, n)
    rel_err = float(jnp.max(jnp.abs(out - ref)) / (jnp.max(jnp.abs(ref)) + 1e-6))
    assert np.isfinite(np.asarray(out)).all()
    assert rel_err < 2e-2, f"relative error too large: {rel_err}"

    print("KERNEL_OK")
</pallas_src>

<mosaic_0001>
module attributes {stable_mosaic.version = 11 : i64} {
  func.func @kernel(%arg0: i32, %arg1: memref<1x64x64xf32, #tpu.memory_space<vmem>>, %arg2: memref<1x1x64xf32, #tpu.memory_space<vmem>>, %arg3: memref<64x64xf32, #tpu.memory_space<vmem>>, %arg4: memref<1x16x64xf32, #tpu.memory_space<vmem>>) attributes {dimension_semantics = [#tpu.dimension_semantics<parallel>], iteration_bounds = array<i64: 2>, scalar_prefetch = 0 : i64, scratch_operands = 0 : i64, tpu.core_type = #tpu.core_type<tc>, window_params = [{transform_indices = @transform_0, window_bounds = array<i64: 1, 64, 64>}, {transform_indices = @transform_1, window_bounds = array<i64: 1, 1, 64>}, {pipeline_mode = #tpu.pipeline_mode<synchronous>, transform_indices = @transform_2, window_bounds = array<i64: 64, 64>}, {transform_indices = @transform_3, window_bounds = array<i64: 1, 16, 64>}]} {
    %c0 = arith.constant 0 : index
    %c0_0 = arith.constant 0 : index
    %c0_1 = arith.constant 0 : index
    %0 = vector.load %arg1[%c0, %c0_0, %c0_1] : memref<1x64x64xf32, #tpu.memory_space<vmem>>, vector<1x64x64xf32>
    %1 = vector.shape_cast %0 : vector<1x64x64xf32> to vector<64x64xf32>
    %c0_2 = arith.constant 0 : index
    %c0_3 = arith.constant 0 : index
    %c0_4 = arith.constant 0 : index
    %2 = vector.load %arg2[%c0_2, %c0_3, %c0_4] : memref<1x1x64xf32, #tpu.memory_space<vmem>>, vector<1x1x64xf32>
    %3 = vector.shape_cast %2 : vector<1x1x64xf32> to vector<1x64xf32>
    %cst = arith.constant 9.99999974E-5 : f32
    %4 = vector.broadcast %cst : f32 to vector<1x64xf32>
    %5 = arith.maximumf %3, %4 : vector<1x64xf32>
    %6 = vector.broadcast %5 : vector<1x64xf32> to vector<64x64xf32>
    %7 = arith.mulf %1, %6 : vector<64x64xf32>
    %cst_5 = arith.constant dense<0.000000e+00> : vector<64x64xf32>
    %8 = tpu.matmul %7, %1, %cst_5 {dimension_numbers = #tpu.dot_dimension_numbers<[1], [1], [0], [0], [0, 0, 1, 0], [], []>} : vector<64x64xf32>, vector<64x64xf32>, vector<64x64xf32> -> vector<64x64xf32>
    %c0_6 = arith.constant 0 : index
    %c0_7 = arith.constant 0 : index
    %9 = vector.load %arg3[%c0_6, %c0_7] : memref<64x64xf32, #tpu.memory_space<vmem>>, vector<64x64xf32>
    %cst_8 = arith.constant dense<0.000000e+00> : vector<64x64xf32>
    %10 = tpu.matmul %8, %9, %cst_8 {dimension_numbers = #tpu.dot_dimension_numbers<[1], [0], [0], [1], [0, 0, 1, 1], [], []>} : vector<64x64xf32>, vector<64x64xf32>, vector<64x64xf32> -> vector<64x64xf32>
    %cst_9 = arith.constant dense<0.000000e+00> : vector<64x64xf32>
    %11 = tpu.matmul %9, %10, %cst_9 {dimension_numbers = #tpu.dot_dimension_numbers<[0], [0], [1], [1], [0, 1, 1, 1], [], []>} : vector<64x64xf32>, vector<64x64xf32>, vector<64x64xf32> -> vector<64x64xf32>
    %12 = vector.extract_strided_slice %11 {offsets = [0, 0], sizes = [16, 16], strides = [1, 1]} : vector<64x64xf32> to vector<16x16xf32>
    %13 = vector.extract_strided_slice %11 {offsets = [16, 16], sizes = [16, 16], strides = [1, 1]} : vector<64x64xf32> to vector<16x16xf32>
    %14 = vector.extract_strided_slice %11 {offsets = [32, 32], sizes = [16, 16], strides = [1, 1]} : vector<64x64xf32> to vector<16x16xf32>
    %15 = vector.extract_strided_slice %11 {offsets = [48, 48], sizes = [16, 16], strides = [1, 1]} : vector<64x64xf32> to vector<16x16xf32>
    %16 = tpu.concatenate %12, %13, %14, %15 in 1 : vector<16x16xf32>, vector<16x16xf32>, vector<16x16xf32>, vector<16x16xf32> -> vector<16x64xf32>
    %c0_10 = arith.constant 0 : index
    %c0_11 = arith.constant 0 : index
    %c0_12 = arith.constant 0 : index
    %17 = vector.load %arg4[%c0_10, %c0_11, %c0_12] : memref<1x16x64xf32, #tpu.memory_space<vmem>>, vector<1x16x64xf32>
    %18 = vector.shape_cast %17 : vector<1x16x64xf32> to vector<16x64xf32>
    %19 = vector.shape_cast %16 : vector<16x64xf32> to vector<1x16x64xf32>
    tpu.vector_store %arg4[%c0_10, %c0_11, %c0_12], %19 {strides = array<i32>} : memref<1x16x64xf32, #tpu.memory_space<vmem>>, vector<1x16x64xf32>,
    return
  }
  func.func @transform_0(%arg0: i32) -> (i32, i32, i32) {
    %c0_i32 = arith.constant 0 : i32
    %c0_i32_0 = arith.constant 0 : i32
    %c0_i32_1 = arith.constant 0 : i32
    return %arg0, %c0_i32, %c0_i32_0 : i32, i32, i32
  }
  func.func @transform_1(%arg0: i32) -> (i32, i32, i32) {
    %c0_i32 = arith.constant 0 : i32
    %c0_i32_0 = arith.constant 0 : i32
    %c0_i32_1 = arith.constant 0 : i32
    return %arg0, %c0_i32, %c0_i32_0 : i32, i32, i32
  }
  func.func @transform_2(%arg0: i32) -> (i32, i32) {
    %c0_i32 = arith.constant 0 : i32
    %c0_i32_0 = arith.constant 0 : i32
    %c0_i32_1 = arith.constant 0 : i32
    return %c0_i32, %c0_i32_0 : i32, i32
  }
  func.func @transform_3(%arg0: i32) -> (i32, i32, i32) {
    %c0_i32 = arith.constant 0 : i32
    %c0_i32_0 = arith.constant 0 : i32
    %c0_i32_1 = arith.constant 0 : i32
    return %arg0, %c0_i32, %c0_i32_0 : i32, i32, i32
  }
}

</mosaic_0001>

<llo_original>
// kernel: tpu_custom_call.1
$region0: #{tpu_custom_call.1}
  #allocation0 [shape = 'u32[]', space=smem, size = 0x4, offset = 0x4, fixed_abs, tag = 'smem constant byte address 0x4 - core index']
  #allocation1 [shape = 'u32[144,128]{1,0:T(1,128)}', space=vmem, size = 0x12000, scoped, tag = 'internal scratch']
  %s0 = inlined_call_operand.hbm [shape: f32[2,64,64], index: 0, kind: input, shape index: {}]
  %s1 = inlined_call_operand.vmem [shape: f32[2,1,64], index: 1, kind: input, shape index: {}]
  %s2 = inlined_call_operand.hbm [shape: f32[64,64], index: 2, kind: input, shape index: {}]
  %s3 = inlined_call_operand.hbm [shape: f32[2,16,64], index: 3, kind: output, shape index: {}]
  %s4 = sld [smem:[#allocation0]]
  $region53: #{tpu_custom_call.1} parent=0
    _
  %s6 = ssub.s32 1, %s4
  %s7 = scalar_select 0, %s6, %s4
  $region1: #{tpu_custom_call.1} parent=0
    #allocation2 [shape = 'u8[65536]{0}', space=vmem, size = 0x10000, scoped, tag = 'input window, operand 0']
    #allocation3 [shape = 's32[2]{0}', space=sflag, size = 0x8, scoped, tag = 'scoped memory for tpu_custom_call.1']
    #allocation4 [shape = 's32[2]{0}', space=sflag, size = 0x8, scoped, tag = 'scoped memory for tpu_custom_call.1']
    #allocation5 [shape = 'u8[32768]{0}', space=vmem, size = 0x8000, scoped, tag = 'input window, operand 2, single buffered']
    #allocation6 [shape = 's32[1]{0}', space=sflag, size = 0x4, scoped, tag = 'scoped memory for tpu_custom_call.1']
    #allocation7 [shape = 'u8[16384]{0}', space=vmem, size = 0x4000, scoped, tag = 'output window, operand 0']
    %8 = vsyncpa [#allocation3], 0
    %s9 = scalar_lea.sflag [#allocation3], 1
    %10 = vsyncpa %s9, 0
    %11 = vsyncpa [#allocation6], 0
    %12 = vsyncpa [#allocation4], 0
    %s13 = scalar_lea.sflag [#allocation4], 1
    %14 = vsyncpa %s13, 0
    loop: start=0, step=1, limit=4
    $region2: #{tpu_custom_call.1} parent=1 // loop_pre_header
      _
    $region3: #{tpu_custom_call.1} parent=1 // loop_header
      %s16 = sphi 0, %s20
      %p17 = scmp.ge.s32.totalorder %s16, 4
      %s26 = sphi 0, %s28
      %s29 = sphi 0, %s26
      %s30 = sphi 0, %s29
      %s46 = sphi 0, %s30
      %s52 = sphi 0, %s54
      %s55 = sphi 0, %s52
      %s56 = sphi 0, %s55
      %s72 = sphi 0, %s56
      %s76 = sphi 0, %s76
      %s78 = sphi 0, %s76
      %s79 = sphi 0, %s78
      %s93 = sphi 0, %s79
      %s99 = sphi 0, %s101
      %s102 = sphi 0, %s99
      %s103 = sphi 0, %s102
      %s119 = sphi 0, %s103
    $region4: #{tpu_custom_call.1} parent=1 // loop_header_branch
      %19 = sbr.rel (%p17) target = $region8
    $region5: #{tpu_custom_call.1} parent=1 // loop_body
      %s21 = ssub.s32 %s16, 1
      %s22 = ssub.s32 %s16, 2
      %s23 = sadd.s32 %s16, 1
      %s24 = ssub.s32 %s16, %s23
      %p25 = scmp.eq.s32.totalorder %s24, 0
      %s27 = sadd.s32 %s26, 1
      %s28 = scalar_select %p25, %s26, %s27
      %p31 = pneg %p25
      %p32 = scmp.eq.s32.totalorder %s16, 1
      %p33 = por %p31, %p32
      %p34 = scmp.ne.s32.totalorder %s26, %s29
      %p35 = scmp.eq.s32.totalorder %s16, 0
      %p36 = por %p34, %p35
      %p37 = scmp.ne.s32.totalorder %s26, %s29
      %p38 = scmp.eq.s32.totalorder %s21, 1
      %p39 = por %p37, %p38
      %p40 = scmp.ne.s32.totalorder %s29, %s30
      %p41 = scmp.eq.s32.totalorder %s21, 0
      %p42 = por %p40, %p41
      %p43 = scmp.ne.s32.totalorder %s29, %s30
      %p44 = scmp.eq.s32.totalorder %s22, 1
      %p45 = por %p43, %p44
      %p47 = scmp.ne.s32.totalorder %s30, %s46
      %p48 = scmp.eq.s32.totalorder %s22, 0
      %p49 = por %p47, %p48
      %s50 = ssub.s32 %s16, %s23
      %p51 = scmp.eq.s32.totalorder %s50, 0
      %s53 = sadd.s32 %s52, 1
      %s54 = scalar_select %p51, %s52, %s53
      %p57 = pneg %p51
      %p58 = scmp.eq.s32.totalorder %s16, 1
      %p59 = por %p57, %p58
      %p60 = scmp.ne.s32.totalorder %s52, %s55
      %p61 = scmp.eq.s32.totalorder %s16, 0
      %p62 = por %p60, %p61
      %p63 = scmp.ne.s32.totalorder %s52, %s55
      %p64 = scmp.eq.s32.totalorder %s21, 1
      %p65 = por %p63, %p64
      %p66 = scmp.ne.s32.totalorder %s55, %s56
      %p67 = scmp.eq.s32.totalorder %s21, 0
      %p68 = por %p66, %p67
      %p69 = scmp.ne.s32.totalorder %s55, %s56
      %p70 = scmp.eq.s32.totalorder %s22, 1
      %p71 = por %p69, %p70
      %p73 = scmp.ne.s32.totalorder %s56, %s72
      %p74 = scmp.eq.s32.totalorder %s22, 0
      %p75 = por %p73, %p74
      %s77 = sadd.s32 %s76, 1
      %p80 = scmp.eq.s32.totalorder %s16, 1
      %p81 = scmp.ne.s32.totalorder %s76, %s78
      %p82 = scmp.eq.s32.totalorder %s16, 0
      %p83 = por %p81, %p82
      %p84 = scmp.ne.s32.totalorder %s76, %s78
      %p85 = scmp.eq.s32.totalorder %s21, 1
      %p86 = por %p84, %p85
      %p87 = scmp.ne.s32.totalorder %s78, %s79
      %p88 = scmp.eq.s32.totalorder %s21, 0
      %p89 = por %p87, %p88
      %p90 = scmp.ne.s32.totalorder %s78, %s79
      %p91 = scmp.eq.s32.totalorder %s22, 1
      %p92 = por %p90, %p91
      %p94 = scmp.ne.s32.totalorder %s79, %s93
      %p95 = scmp.eq.s32.totalorder %s22, 0
      %p96 = por %p94, %p95
      %s97 = ssub.s32 %s16, %s23
      %p98 = scmp.eq.s32.totalorder %s97, 0
      %s100 = sadd.s32 %s99, 1
      %s101 = scalar_select %p98, %s99, %s100
      %p104 = pneg %p98
      %p105 = scmp.eq.s32.totalorder %s16, 1
      %p106 = por %p104, %p105
      %p107 = scmp.ne.s32.totalorder %s99, %s102
      %p108 = scmp.eq.s32.totalorder %s16, 0
      %p109 = por %p107, %p108
      %p110 = scmp.ne.s32.totalorder %s99, %s102
      %p111 = scmp.eq.s32.totalorder %s21, 1
      %p112 = por %p110, %p111
      %p113 = scmp.ne.s32.totalorder %s102, %s103
      %p114 = scmp.eq.s32.totalorder %s21, 0
      %p115 = por %p113, %p114
      %p116 = scmp.ne.s32.totalorder %s102, %s103
      %p117 = scmp.eq.s32.totalorder %s22, 1
      %p118 = por %p116, %p117
      %p120 = scmp.ne.s32.totalorder %s103, %s119
      %p121 = scmp.eq.s32.totalorder %s22, 0
      %p122 = por %p120, %p121
      %p123 = scmp.le.s32.totalorder 1, %s16
      %p124 = scmp.lt.s32.totalorder %s16, 3
      %p125 = pnand %p123, %p124
      %p126 = pneg %p125
      // Predicated region
      $region9: #{tpu_custom_call.1} parent=5 // pred_check
        _
      $region10: #{tpu_custom_call.1} parent=5 // pred_check_branch
        %128 = sbr.rel (%p125) target = $region12
      $region11: #{tpu_custom_call.1} parent=5 // pred_region
        %s129 = ssub.s32 %s16, 1
        // Predicated region
        $region13: #{tpu_custom_call.1} parent=11 // pred_check
          %p130 = pneg %p89
        $region14: #{tpu_custom_call.1} parent=11 // pred_check_branch
          %132 = sbr.rel (%p130) target = $region16
        $region15: #{tpu_custom_call.1} parent=11 // pred_region
          %s134 = ssub.s32 1024, 1024
          %135 = vsyncadd [#allocation6], %s134
          %s136 = sshll.u32 [#allocation5], 4
          %s137 = int_to_ptr.vmem [resolvable:$true] %s136
          %142 = dma.hbm_to_vmem [thread:$0]  %s2, 1024, %s137, [#allocation6], 128, 128, 8
        $region16: #{tpu_custom_call.1} parent=11 // pred_fallthru
          _
      $region12: #{tpu_custom_call.1} parent=5 // pred_fallthru
        _
      %p143 = scmp.lt.s32.totalorder %s16, 2
      // Predicated region
      $region17: #{tpu_custom_call.1} parent=5 // pred_check
        %p144 = pneg %p143
      $region18: #{tpu_custom_call.1} parent=5 // pred_check_branch
        %146 = sbr.rel (%p144) target = $region20
      $region19: #{tpu_custom_call.1} parent=5 // pred_region
        // Predicated region
        $region21: #{tpu_custom_call.1} parent=19 // pred_check
          %p147 = pneg %p36
        $region22: #{tpu_custom_call.1} parent=19 // pred_check_branch
          %149 = sbr.rel (%p147) target = $region24
        $region23: #{tpu_custom_call.1} parent=19 // pred_region
          %s150 = sand.u32 %s26, 1
          %s151 = scalar_lea.sflag [#allocation3], %s150
          %s152 = sand.u32 %s26, 1
          %s153 = smul.addr %s152, 64
          %s154 = scalar_lea.vmem [#allocation2], %s153
          %s156 = ssub.s32 1024, 1024
          %157 = vsyncadd %s151, %s156
          %s158 = smul.addr %s16, 8
          %s159 = smul.addr %s158, 128
          %s160 = scalar_lea.hbm %s0, %s159
          %s161 = sshll.u32 %s154, 4
          %s162 = int_to_ptr.vmem [resolvable:$true] %s161
          %167 = dma.hbm_to_vmem [thread:$0]  %s160, 1024, %s162, %s151, 128, 128, 8
        $region24: #{tpu_custom_call.1} parent=19 // pred_fallthru
          _
        // Predicated region
        $region25: #{tpu_custom_call.1} parent=19 // pred_check
          %p168 = pneg %p62
        $region26: #{tpu_custom_call.1} parent=19 // pred_check_branch
          %170 = sbr.rel (%p168) target = $region28
        $region27: #{tpu_custom_call.1} parent=19 // pred_region
          %p171 = scmp.lt.s32.totalorder %s16, 1
          %s172 = scalar_select %p171, %s16, 1
          %s173 = scalar_lea.vmem %s1, %s172
        $region28: #{tpu_custom_call.1} parent=19 // pred_fallthru
          _
      $region20: #{tpu_custom_call.1} parent=5 // pred_fallthru
        _
      %p174 = scmp.le.s32.totalorder 1, %s16
      %p175 = scmp.lt.s32.totalorder %s16, 3
      %p176 = pnand %p174, %p175
      %p177 = pneg %p176
      // Predicated region
      $region29: #{tpu_custom_call.1} parent=5 // pred_check
        _
      $region30: #{tpu_custom_call.1} parent=5 // pred_check_branch
        %179 = sbr.rel (%p176) target = $region32
      $region31: #{tpu_custom_call.1} parent=5 // pred_region
        %s180 = ssub.s32 %s16, 1
        %s181 = sand.u32 %s29, 1
        %s182 = scalar_lea.sflag [#allocation3], %s181
        %s183 = sand.u32 %s29, 1
        %s184 = smul.addr %s183, 64
        %s185 = scalar_lea.vmem [#allocation2], %s184
        // Predicated region
        $region33: #{tpu_custom_call.1} parent=31 // pred_check
          %p186 = pneg %p42
        $region34: #{tpu_custom_call.1} parent=31 // pred_check_branch
          %188 = sbr.rel (%p186) target = $region36
        $region35: #{tpu_custom_call.1} parent=31 // pred_region
          %189 = dma.done %s182, 1024
        $region36: #{tpu_custom_call.1} parent=31 // pred_fallthru
          _
        // Predicated region
        $region37: #{tpu_custom_call.1} parent=31 // pred_check
          %p190 = pneg %p89
        $region38: #{tpu_custom_call.1} parent=31 // pred_check_branch
          %192 = sbr.rel (%p190) target = $region40
        $region39: #{tpu_custom_call.1} parent=31 // pred_region
          %193 = dma.done [#allocation6], 1024
        $region40: #{tpu_custom_call.1} parent=31 // pred_fallthru
          _
        %s194 = sand.u32 %s29, 1
        %s195 = scalar_lea.sflag [#allocation3], %s194
        %s196 = sand.u32 %s29, 1
        %s197 = smul.addr %s196, 64
        %s198 = scalar_lea.vmem [#allocation2], %s197
        %p199 = pneg %p42
        %p200 = pneg %p39
        %p201 = scmp.lt.s32.totalorder %s21, 1
        %s202 = scalar_select %p201, %s21, 1
        %s203 = scalar_lea.vmem %s1, %s202
        %p204 = pneg %p68
        %p205 = pneg %p65
        %p206 = pneg %p89
        %p207 = pneg %p86
        %p208 = pneg %p115
        %p209 = pneg %p112
        %s210 = sand.u32 %s102, 1
        %s211 = scalar_lea.sflag [#allocation4], %s210
        %s212 = sand.u32 %s102, 1
        %s213 = smul.addr %s212, 16
        %s214 = scalar_lea.vmem [#allocation7], %s213
        %p215 = scmp.lt.s32.totalorder %s21, 1
        %s216 = scalar_select %p215, %s21, 1
        %s217 = scalar_lea.vmem %s1, %s216
        %v218 = vld [vmem:[%s185] sm:$0xff]
        %v219 = vld [vmem:[%s185 + $0x8] sm:$0xff]
        %v220 = vld [vmem:[%s185 + $0x10] sm:$0xff]
        %v221 = vld [vmem:[%s185 + $0x18] sm:$0xff]
        %v222 = vld [vmem:[%s185 + $0x20] sm:$0xff]
        %v223 = vld [vmem:[%s185 + $0x28] sm:$0xff]
        %v224 = vld [vmem:[%s185 + $0x30] sm:$0xff]
        %v225 = vld [vmem:[%s185 + $0x38] sm:$0xff]
        %v226 = vld [vmem:[%s217] sm:$0x1]
        %v227 = vmax.f32 %v226, 0.0001
        %v229 = vlaneseq
        %v230 = vshrl.u32 %v229, 7
        %v231 = vsub.s32 0, %v230
        %v232 = vrot.slane %v227, %v231
        %v234 = vmul.f32 %v218, %v232
        %v235 = vmul.f32 %v219, %v232
        %v236 = vmul.f32 %v220, %v232
        %v237 = vmul.f32 %v221, %v232
        %v238 = vmul.f32 %v222, %v232
        %v239 = vmul.f32 %v223, %v232
        %v240 = vmul.f32 %v224, %v232
        %v241 = vmul.f32 %v225, %v232
        %vm242 = vcmask 523264
        %v244 = vsel %vm242, %v234, 0
        %v247 = vsel %vm242, %v235, 0
        %v250 = vsel %vm242, %v236, 0
        %v253 = vsel %vm242, %v237, 0
        %v256 = vsel %vm242, %v238, 0
        %v259 = vsel %vm242, %v239, 0
        %v262 = vsel %vm242, %v240, 0
        %v265 = vsel %vm242, %v241, 0
        %v268 = vsel %vm242, %v218, 0
        %v271 = vsel %vm242, %v219, 0
        %v274 = vsel %vm242, %v220, 0
        %v277 = vsel %vm242, %v221, 0
        %v280 = vsel %vm242, %v222, 0
        %v283 = vsel %vm242, %v223, 0
        %v286 = vsel %vm242, %v224, 0
        %v289 = vsel %vm242, %v225, 0
        %291 = vmatprep.subr.mxu0 0.0
        %292 = vmatpush1.xpose.msra.mxu0 %v268
        %293 = vmatprep.subr.mxu0 0.0
        %294 = vmatpush1.xpose.msra.mxu0 %v271
        %295 = vmatprep.subr.mxu0 0.0
        %296 = vmatpush1.xpose.msra.mxu0 %v274
        %297 = vmatprep.subr.mxu0 0.0
        %298 = vmatpush1.xpose.msra.mxu0 %v277
        %299 = vmatprep.subr.mxu0 0.0
        %300 = vmatpush1.xpose.msra.mxu0 %v280
        %301 = vmatprep.subr.mxu0 0.0
        %302 = vmatpush1.xpose.msra.mxu0 %v283
        %303 = vmatprep.subr.mxu0 0.0
        %304 = vmatpush1.xpose.msra.mxu0 %v286
        %305 = vmatprep.subr.mxu0 0.0
        %306 = vmatpush1.xpose.msra.mxu0 %v289
        %307 = vmatprep.subr.mxu0 0.0
        %308 = vmatpush1.xpose.msra.mxu0 0.0
        %309 = vmatprep.subr.mxu0 0.0
        %310 = vmatpush1.xpose.msra.mxu0 0.0
        %311 = vmatprep.subr.mxu0 0.0
        %312 = vmatpush1.xpose.msra.mxu0 0.0
        %313 = vmatprep.subr.mxu0 0.0
        %314 = vmatpush1.xpose.msra.mxu0 0.0
        %315 = vmatprep.subr.mxu0 0.0
        %316 = vmatpush1.xpose.msra.mxu0 0.0
        %317 = vmatprep.subr.mxu0 0.0
        %318 = vmatpush1.xpose.msra.mxu0 0.0
        %319 = vmatprep.subr.mxu0 0.0
        %320 = vmatpush1.xpose.msra.mxu0 0.0
        %321 = vmatprep.subr.mxu0 0.0
        %322 = vmatpush1.xpose.msra.mxu0 0.0
        %323 = vmatprep.subr.mxu0 0.0
        %324 = vmatpush1.xpose.msra.mxu0 0.0
        %325 = vmatprep.subr.mxu0 0.0
        %326 = vmatpush1.xpose.msra.mxu0 0.0
        %327 = vmatprep.subr.mxu0 0.0
        %328 = vmatpush1.xpose.msra.mxu0 0.0
        %329 = vmatprep.subr.mxu0 0.0
        %330 = vmatpush1.xpose.msra.mxu0 0.0
        %331 = vmatprep.subr.mxu0 0.0
        %332 = vmatpush1.xpose.msra.mxu0 0.0
        %333 = vmatprep.subr.mxu0 0.0
        %334 = vmatpush1.xpose.msra.mxu0 0.0
        %335 = vmatprep.subr.mxu0 0.0
        %336 = vmatpush1.xpose.msra.mxu0 0.0
        %337 = vmatprep.subr.mxu0 0.0
        %338 = vmatpush1.xpose.msra.mxu0 0.0
        %339 = vmatprep.subr.mxu0 0.0
        %340 = vmatpush1.xpose.msra.mxu0 0.0
        %341 = vmatprep.subr.mxu0 0.0
        %342 = vmatpush1.xpose.msra.mxu0 0.0
        %343 = vmatprep.subr.mxu0 0.0
        %344 = vmatpush1.xpose.msra.mxu0 0.0
        %345 = vmatprep.subr.mxu0 0.0
        %346 = vmatpush1.xpose.msra.mxu0 0.0
        %347 = vmatprep.subr.mxu0 0.0
        %348 = vmatpush1.xpose.msra.mxu0 0.0
        %349 = vmatprep.subr.mxu0 0.0
        %350 = vmatpush1.xpose.msra.mxu0 0.0
        %351 = vmatprep.subr.mxu0 0.0
        %352 = vmatpush1.xpose.msra.mxu0 0.0
        %353 = vmatprep.subr.mxu0 0.0
        %354 = vmatpush1.xpose.msra.mxu0 0.0
        %355 = vmatprep.mubr.f32.mxu0 0.0
        %356 = vmatmul.mubr.f32.gmra.mrb[0].mxu0 %v244
        %v357 = vpop.f32.mrb[0].mxu0
        %v358 = vadd.f32 0.0, %v357
        %v359 = vpop.f32.mrb[0].mxu0
        %360 = vmatprep.mubr.f32.mxu0 0.0
        %361 = vmatmul.mubr.f32.gmra.mrb[0].mxu0 %v247
        %v362 = vpop.f32.mrb[0].mxu0
        %v363 = vadd.f32 0.0, %v362
        %v364 = vpop.f32.mrb[0].mxu0
        %365 = vmatprep.mubr.f32.mxu0 0.0
        %366 = vmatmul.mubr.f32.gmra.mrb[0].mxu0 %v250
        %v367 = vpop.f32.mrb[0].mxu0
        %v368 = vadd.f32 0.0, %v367
        %v369 = vpop.f32.mrb[0].mxu0
        %370 = vmatprep.mubr.f32.mxu0 0.0
        %371 = vmatmul.mubr.f32.gmra.mrb[0].mxu0 %v253
        %v372 = vpop.f32.mrb[0].mxu0
        %v373 = vadd.f32 0.0, %v372
        %v374 = vpop.f32.mrb[0].mxu0
        %375 = vmatprep.mubr.f32.mxu0 0.0
        %376 = vmatmul.mubr.f32.gmra.mrb[0].mxu0 %v256
        %v377 = vpop.f32.mrb[0].mxu0
        %v378 = vadd.f32 0.0, %v377
        %v379 = vpop.f32.mrb[0].mxu0
        %380 = vmatprep.mubr.f32.mxu0 0.0
        %381 = vmatmul.mubr.f32.gmra.mrb[0].mxu0 %v259
        %v382 = vpop.f32.mrb[0].mxu0
        %v383 = vadd.f32 0.0, %v382
        %v384 = vpop.f32.mrb[0].mxu0
        %385 = vmatprep.mubr.f32.mxu0 0.0
        %386 = vmatmul.mubr.f32.gmra.mrb[0].mxu0 %v262
        %v387 = vpop.f32.mrb[0].mxu0
        %v388 = vadd.f32 0.0, %v387
        %v389 = vpop.f32.mrb[0].mxu0
        %390 = vmatprep.mubr.f32.mxu0 0.0
        %391 = vmatmul.mubr.f32.gmra.mrb[0].mxu0 %v265
        %v392 = vpop.f32.mrb[0].mxu0
        %v393 = vadd.f32 0.0, %v392
        %v394 = vpop.f32.mrb[0].mxu0
        %395 = vdwg.mxu0
        %v396 = vld [vmem:[#allocation5] sm:$0xff]
        %v397 = vld [vmem:[#allocation5 + $0x8] sm:$0xff]
        %v398 = vld [vmem:[#allocation5 + $0x10] sm:$0xff]
        %v399 = vld [vmem:[#allocation5 + $0x18] sm:$0xff]
        %v400 = vld [vmem:[#allocation5 + $0x20] sm:$0xff]
        %v401 = vld [vmem:[#allocation5 + $0x28] sm:$0xff]
        %v402 = vld [vmem:[#allocation5 + $0x30] sm:$0xff]
        %v403 = vld [vmem:[#allocation5 + $0x38] sm:$0xff]
        %v405 = vsel %vm242, %v358, 0
        %v408 = vsel %vm242, %v363, 0
        %v411 = vsel %vm242, %v368, 0
        %v414 = vsel %vm242, %v373, 0
        %v417 = vsel %vm242, %v378, 0
        %v420 = vsel %vm242, %v383, 0
        %v423 = vsel %vm242, %v388, 0
        %v426 = vsel %vm242, %v393, 0
        %428 = vmatprep.subr.mxu0 0.0
        %429 = vmatpush1.msra.mxu0 %v396
        %430 = vmatprep.subr.mxu0 0.0
        %431 = vmatpush1.msra.mxu0 %v397
        %432 = vmatprep.subr.mxu0 0.0
        %433 = vmatpush1.msra.mxu0 %v398
        %434 = vmatprep.subr.mxu0 0.0
        %435 = vmatpush1.msra.mxu0 %v399
        %436 = vmatprep.subr.mxu0 0.0
        %437 = vmatpush1.msra.mxu0 %v400
        %438 = vmatprep.subr.mxu0 0.0
        %439 = vmatpush1.msra.mxu0 %v401
        %440 = vmatprep.subr.mxu0 0.0
        %441 = vmatpush1.msra.mxu0 %v402
        %442 = vmatprep.subr.mxu0 0.0
        %443 = vmatpush1.msra.mxu0 %v403
        %444 = vmatprep.subr.mxu0 0.0
        %445 = vmatpush1.msra.mxu0 0.0
        %446 = vmatprep.subr.mxu0 0.0
        %447 = vmatpush1.msra.mxu0 0.0
        %448 = vmatprep.subr.mxu0 0.0
        %449 = vmatpush1.msra.mxu0 0.0
        %450 = vmatprep.subr.mxu0 0.0
        %451 = vmatpush1.msra.mxu0 0.0
        %452 = vmatprep.subr.mxu0 0.0
        %453 = vmatpush1.msra.mxu0 0.0
        %454 = vmatprep.subr.mxu0 0.0
        %455 = vmatpush1.msra.mxu0 0.0
        %456 = vmatprep.subr.mxu0 0.0
        %457 = vmatpush1.msra.mxu0 0.0
        %458 = vmatprep.subr.mxu0 0.0
        %459 = vmatpush1.msra.mxu0 0.0
        %460 = vmatprep.subr.mxu0 0.0
        %461 = vmatpush1.msra.mxu0 0.0
        %462 = vmatprep.subr.mxu0 0.0
        %463 = vmatpush1.msra.mxu0 0.0
        %464 = vmatprep.subr.mxu0 0.0
        %465 = vmatpush1.msra.mxu0 0.0
        %466 = vmatprep.subr.mxu0 0.0
        %467 = vmatpush1.msra.mxu0 0.0
        %468 = vmatprep.subr.mxu0 0.0
        %469 = vmatpush1.msra.mxu0 0.0
        %470 = vmatprep.subr.mxu0 0.0
        %471 = vmatpush1.msra.mxu0 0.0
        %472 = vmatprep.subr.mxu0 0.0
        %473 = vmatpush1.msra.mxu0 0.0
        %474 = vmatprep.subr.mxu0 0.0
        %475 = vmatpush1.msra.mxu0 0.0
        %476 = vmatprep.subr.mxu0 0.0
        %477 = vmatpush1.msra.mxu0 0.0
        %478 = vmatprep.subr.mxu0 0.0
        %479 = vmatpush1.msra.mxu0 0.0
        %480 = vmatprep.subr.mxu0 0.0
        %481 = vmatpush1.msra.mxu0 0.0
        %482 = vmatprep.subr.mxu0 0.0
        %483 = vmatpush1.msra.mxu0 0.0
        %484 = vmatprep.subr.mxu0 0.0
        %485 = vmatpush1.msra.mxu0 0.0
        %486 = vmatprep.subr.mxu0 0.0
        %487 = vmatpush1.msra.mxu0 0.0
        %488 = vmatprep.subr.mxu0 0.0
        %489 = vmatpush1.msra.mxu0 0.0
        %490 = vmatprep.subr.mxu0 0.0
        %491 = vmatpush1.msra.mxu0 0.0
        %492 = vmatprep.mubr.f32.mxu0 0.0
        %493 = vmatmul.mubr.f32.gmra.mrb[0].mxu0 %v405
        %v494 = vpop.f32.mrb[0].mxu0
        %v495 = vadd.f32 0.0, %v494
        %v496 = vpop.f32.mrb[0].mxu0
        %497 = vmatprep.mubr.f32.mxu0 0.0
        %498 = vmatmul.mubr.f32.gmra.mrb[0].mxu0 %v408
        %v499 = vpop.f32.mrb[0].mxu0
        %v500 = vadd.f32 0.0, %v499
        %v501 = vpop.f32.mrb[0].mxu0
        %502 = vmatprep.mubr.f32.mxu0 0.0
        %503 = vmatmul.mubr.f32.gmra.mrb[0].mxu0 %v411
        %v504 = vpop.f32.mrb[0].mxu0
        %v505 = vadd.f32 0.0, %v504
        %v506 = vpop.f32.mrb[0].mxu0
        %507 = vmatprep.mubr.f32.mxu0 0.0
        %508 = vmatmul.mubr.f32.gmra.mrb[0].mxu0 %v414
        %v509 = vpop.f32.mrb[0].mxu0
        %v510 = vadd.f32 0.0, %v509
        %v511 = vpop.f32.mrb[0].mxu0
        %512 = vmatprep.mubr.f32.mxu0 0.0
        %513 = vmatmul.mubr.f32.gmra.mrb[0].mxu0 %v417
        %v514 = vpop.f32.mrb[0].mxu0
        %v515 = vadd.f32 0.0, %v514
        %v516 = vpop.f32.mrb[0].mxu0
        %517 = vmatprep.mubr.f32.mxu0 0.0
        %518 = vmatmul.mubr.f32.gmra.mrb[0].mxu0 %v420
        %v519 = vpop.f32.mrb[0].mxu0
        %v520 = vadd.f32 0.0, %v519
        %v521 = vpop.f32.mrb[0].mxu0
        %522 = vmatprep.mubr.f32.mxu0 0.0
        %523 = vmatmul.mubr.f32.gmra.mrb[0].mxu0 %v423
        %v524 = vpop.f32.mrb[0].mxu0
        %v525 = vadd.f32 0.0, %v524
        %v526 = vpop.f32.mrb[0].mxu0
        %527 = vmatprep.mubr.f32.mxu0 0.0
        %528 = vmatmul.mubr.f32.gmra.mrb[0].mxu0 %v426
        %v529 = vpop.f32.mrb[0].mxu0
        %v530 = vadd.f32 0.0, %v529
        %v531 = vpop.f32.mrb[0].mxu0
        %532 = vdwg.mxu0
        %533 = vxpose.xlu0.b32.start [1/16] %v396, 128
        %534 = vxpose.xlu0.b32.cont [2/16] %v397, 128
        %535 = vxpose.xlu0.b32.cont [3/16] %v398, 128
        %536 = vxpose.xlu0.b32.cont [4/16] %v399, 128
        %537 = vxpose.xlu0.b32.cont [5/16] %v400, 128
        %538 = vxpose.xlu0.b32.cont [6/16] %v401, 128
        %539 = vxpose.xlu0.b32.cont [7/16] %v402, 128
        %540 = vxpose.xlu0.b32.cont [8/16] %v403, 128
        %541 = vxpose.xlu0.b32.cont [9/16] 0.0, 128
        %542 = vxpose.xlu0.b32.cont [10/16] 0.0, 128
        %543 = vxpose.xlu0.b32.cont [11/16] 0.0, 128
        %544 = vxpose.xlu0.b32.cont [12/16] 0.0, 128
        %545 = vxpose.xlu0.b32.cont [13/16] 0.0, 128
        %546 = vxpose.xlu0.b32.cont [14/16] 0.0, 128
        %547 = vxpose.xlu0.b32.cont [15/16] 0.0, 128
        %548 = vxpose.xlu0.b32.end [16/16] 0.0, 128
        %v549 = vpop.trf.xlu0
        %v550 = vpop.trf.xlu0
        %v551 = vpop.trf.xlu0
        %v552 = vpop.trf.xlu0
        %v553 = vpop.trf.xlu0
        %v554 = vpop.trf.xlu0
        %v555 = vpop.trf.xlu0
        %v556 = vpop.trf.xlu0
        %v557 = vpop.trf.xlu0
        %v558 = vpop.trf.xlu0
        %v559 = vpop.trf.xlu0
        %v560 = vpop.trf.xlu0
        %v561 = vpop.trf.xlu0
        %v562 = vpop.trf.xlu0
        %v563 = vpop.trf.xlu0
        %v564 = vpop.trf.xlu0
        %v566 = vsel %vm242, %v549, 0
        %v569 = vsel %vm242, %v550, 0
        %v572 = vsel %vm242, %v551, 0
        %v575 = vsel %vm242, %v552, 0
        %v578 = vsel %vm242, %v553, 0
        %v581 = vsel %vm242, %v554, 0
        %v584 = vsel %vm242, %v555, 0
        %v587 = vsel %vm242, %v556, 0
        %589 = vmatprep.subr.mxu0 0.0
        %590 = vmatpush1.msra.mxu0 %v495
        %591 = vmatprep.subr.mxu0 0.0
        %592 = vmatpush1.msra.mxu0 %v500
        %593 = vmatprep.subr.mxu0 0.0
        %594 = vmatpush1.msra.mxu0 %v505
        %595 = vmatprep.subr.mxu0 0.0
        %596 = vmatpush1.msra.mxu0 %v510
        %597 = vmatprep.subr.mxu0 0.0
        %598 = vmatpush1.msra.mxu0 %v515
        %599 = vmatprep.subr.mxu0 0.0
        %600 = vmatpush1.msra.mxu0 %v520
        %601 = vmatprep.subr.mxu0 0.0
        %602 = vmatpush1.msra.mxu0 %v525
        %603 = vmatprep.subr.mxu0 0.0
        %604 = vmatpush1.msra.mxu0 %v530
        %605 = vmatprep.subr.mxu0 0.0
        %606 = vmatpush1.msra.mxu0 0.0
        %607 = vmatprep.subr.mxu0 0.0
        %608 = vmatpush1.msra.mxu0 0.0
        %609 = vmatprep.subr.mxu0 0.0
        %610 = vmatpush1.msra.mxu0 0.0
        %611 = vmatprep.subr.mxu0 0.0
        %612 = vmatpush1.msra.mxu0 0.0
        %613 = vmatprep.subr.mxu0 0.0
        %614 = vmatpush1.msra.mxu0 0.0
        %615 = vmatprep.subr.mxu0 0.0
        %616 = vmatpush1.msra.mxu0 0.0
        %617 = vmatprep.subr.mxu0 0.0
        %618 = vmatpush1.msra.mxu0 0.0
        %619 = vmatprep.subr.mxu0 0.0
        %620 = vmatpush1.msra.mxu0 0.0
        %621 = vmatprep.subr.mxu0 0.0
        %622 = vmatpush1.msra.mxu0 0.0
        %623 = vmatprep.subr.mxu0 0.0
        %624 = vmatpush1.msra.mxu0 0.0
        %625 = vmatprep.subr.mxu0 0.0
        %626 = vmatpush1.msra.mxu0 0.0
        %627 = vmatprep.subr.mxu0 0.0
        %628 = vmatpush1.msra.mxu0 0.0
        %629 = vmatprep.subr.mxu0 0.0
        %630 = vmatpush1.msra.mxu0 0.0
        %631 = vmatprep.subr.mxu0 0.0
        %632 = vmatpush1.msra.mxu0 0.0
        %633 = vmatprep.subr.mxu0 0.0
        %634 = vmatpush1.msra.mxu0 0.0
        %635 = vmatprep.subr.mxu0 0.0
        %636 = vmatpush1.msra.mxu0 0.0
        %637 = vmatprep.subr.mxu0 0.0
        %638 = vmatpush1.msra.mxu0 0.0
        %639 = vmatprep.subr.mxu0 0.0
        %640 = vmatpush1.msra.mxu0 0.0
        %641 = vmatprep.subr.mxu0 0.0
        %642 = vmatpush1.msra.mxu0 0.0
        %643 = vmatprep.subr.mxu0 0.0
        %644 = vmatpush1.msra.mxu0 0.0
        %645 = vmatprep.subr.mxu0 0.0
        %646 = vmatpush1.msra.mxu0 0.0
        %647 = vmatprep.subr.mxu0 0.0
        %648 = vmatpush1.msra.mxu0 0.0
        %649 = vmatprep.subr.mxu0 0.0
        %650 = vmatpush1.msra.mxu0 0.0
        %651 = vmatprep.subr.mxu0 0.0
        %652 = vmatpush1.msra.mxu0 0.0
        %653 = vmatprep.mubr.f32.mxu0 0.0
        %654 = vmatmul.mubr.f32.gmra.mrb[0].mxu0 %v566
        %v655 = vpop.f32.mrb[0].mxu0
        %v656 = vadd.f32 0.0, %v655
        %v657 = vpop.f32.mrb[0].mxu0
        %658 = vmatprep.mubr.f32.mxu0 0.0
        %659 = vmatmul.mubr.f32.gmra.mrb[0].mxu0 %v569
        %v660 = vpop.f32.mrb[0].mxu0
        %v661 = vadd.f32 0.0, %v660
        %v662 = vpop.f32.mrb[0].mxu0
        %663 = vmatprep.mubr.f32.mxu0 0.0
        %664 = vmatmul.mubr.f32.gmra.mrb[0].mxu0 %v572
        %v665 = vpop.f32.mrb[0].mxu0
        %v666 = vadd.f32 0.0, %v665
        %v667 = vpop.f32.mrb[0].mxu0
        %668 = vmatprep.mubr.f32.mxu0 0.0
        %669 = vmatmul.mubr.f32.gmra.mrb[0].mxu0 %v575
        %v670 = vpop.f32.mrb[0].mxu0
        %v671 = vadd.f32 0.0, %v670
        %v672 = vpop.f32.mrb[0].mxu0
        %673 = vmatprep.mubr.f32.mxu0 0.0
        %674 = vmatmul.mubr.f32.gmra.mrb[0].mxu0 %v578
        %v675 = vpop.f32.mrb[0].mxu0
        %v676 = vadd.f32 0.0, %v675
        %v677 = vpop.f32.mrb[0].mxu0
        %678 = vmatprep.mubr.f32.mxu0 0.0
        %679 = vmatmul.mubr.f32.gmra.mrb[0].mxu0 %v581
        %v680 = vpop.f32.mrb[0].mxu0
        %v681 = vadd.f32 0.0, %v680
        %v682 = vpop.f32.mrb[0].mxu0
        %683 = vmatprep.mubr.f32.mxu0 0.0
        %684 = vmatmul.mubr.f32.gmra.mrb[0].mxu0 %v584
        %v685 = vpop.f32.mrb[0].mxu0
        %v686 = vadd.f32 0.0, %v685
        %v687 = vpop.f32.mrb[0].mxu0
        %688 = vmatprep.mubr.f32.mxu0 0.0
        %689 = vmatmul.mubr.f32.gmra.mrb[0].mxu0 %v587
        %v690 = vpop.f32.mrb[0].mxu0
        %v691 = vadd.f32 0.0, %v690
        %v692 = vpop.f32.mrb[0].mxu0
        %693 = vdwg.mxu0
        %vm694 = vcmask 130048
        %v695 = vsel %vm694, %v656, %v666
        %v696 = vsel %vm694, %v661, %v671
        %vm697 = vcmask 261120
        %v698 = vsel %vm697, %v695, %v676
        %v699 = vsel %vm697, %v696, %v681
        %vm700 = vcmask 392192
        %v701 = vsel %vm700, %v698, %v686
        %v702 = vsel %vm700, %v699, %v691
        %703 = vst.msk [vmem:[%s214] sm:$0xff] %vm242, %v701
        %704 = vst.msk [vmem:[%s214 + $0x8] sm:$0xff] %vm242, %v702
        %s705 = sand.u32 %s102, 1
        %s706 = scalar_lea.sflag [#allocation4], %s705
        %s707 = sand.u32 %s102, 1
        %s708 = smul.addr %s707, 16
        %s709 = scalar_lea.vmem [#allocation7], %s708
        // Predicated region
        $region41: #{tpu_custom_call.1} parent=31 // pred_check
          %p710 = pneg %p112
        $region42: #{tpu_custom_call.1} parent=31 // pred_check_branch
          %712 = sbr.rel (%p710) target = $region44
        $region43: #{tpu_custom_call.1} parent=31 // pred_region
          %s714 = ssub.s32 256, 256
          %715 = vsyncadd %s706, %s714
          %s716 = smul.addr %s21, 2
          %s717 = smul.addr %s716, 128
          %s718 = scalar_lea.hbm %s3, %s717
          %s719 = sshll.u32 %s709, 4
          %s720 = int_to_ptr.vmem [resolvable:$true] %s719
          %725 = dma.vmem_to_hbm [thread:$0]  %s720, 256, %s718, %s706, 128, 128, 8
        $region44: #{tpu_custom_call.1} parent=31 // pred_fallthru
          _
      $region32: #{tpu_custom_call.1} parent=5 // pred_fallthru
        _
      %p726 = scmp.le.s32.totalorder 2, %s16
      // Predicated region
      $region45: #{tpu_custom_call.1} parent=5 // pred_check
        %p727 = pneg %p726
      $region46: #{tpu_custom_call.1} parent=5 // pred_check_branch
        %729 = sbr.rel (%p727) target = $region48
      $region47: #{tpu_custom_call.1} parent=5 // pred_region
        %s730 = ssub.s32 %s16, 2
        // Predicated region
        $region49: #{tpu_custom_call.1} parent=47 // pred_check
          %p731 = pneg %p118
        $region50: #{tpu_custom_call.1} parent=47 // pred_check_branch
          %733 = sbr.rel (%p731) target = $region52
        $region51: #{tpu_custom_call.1} parent=47 // pred_region
          %s734 = sand.u32 %s103, 1
          %s735 = scalar_lea.sflag [#allocation4], %s734
          %s736 = sand.u32 %s103, 1
          %s737 = smul.addr %s736, 16
          %s738 = scalar_lea.vmem [#allocation7], %s737
          %739 = dma.done %s735, 256
        $region52: #{tpu_custom_call.1} parent=47 // pred_fallthru
          _
      $region48: #{tpu_custom_call.1} parent=5 // pred_fallthru
        _
    $region6: #{tpu_custom_call.1} parent=1 // loop_footer
      %s20 = sadd.s32 1, %s16
    $region7: #{tpu_custom_call.1} parent=1 // loop_footer_branch
      %15 = sbr.rel target = $region3
    $region8: #{tpu_custom_call.1} parent=1 // loop_exit
      _
    %740 = vsyncpa [#allocation3], 1
    %s741 = scalar_lea.sflag [#allocation3], 1
    %742 = vsyncpa %s741, 1
    %743 = vsyncpa [#allocation6], 1
    %744 = vsyncpa [#allocation4], 1
    %s745 = scalar_lea.sflag [#allocation4], 1
    %746 = vsyncpa %s745, 1

</llo_original>
